<compile_context>
chip_gen: v7x
topology: tpu7x:2x2x1
jax: 0.10.0
libtpu: 0.0.40
codegen_flags: <defaults>
</compile_context>

<pallas_src>
import functools

import jax
import jax.numpy as jnp
from jax.experimental import pallas as pl
from jax.experimental.pallas import tpu as pltpu


def _focal_reverse_kernel(x_ref, t_ref, out_ref, acc_ref, *,
                          gamma, C, tile_p, hw, inv_m, size_average):
    n = pl.program_id(0)          # batch axis
    p = pl.program_id(1)          # pixel-tile axis (iterated fastest)
    is_first = jnp.logical_and(n == 0, p == 0)
    is_last = jnp.logical_and(n == pl.num_programs(0) - 1,
                              p == pl.num_programs(1) - 1)

    @pl.when(is_first)
    def _():
        acc_ref[...] = jnp.zeros_like(acc_ref)

    x = x_ref[0].astype(jnp.float32)   # (C, tile_p)  classes on sublanes
    t = t_ref[0]                       # (1, tile_p)  int32 target ids

    # Row-wise max over the (small, static) class axis — unrolled, pure VPU.
    m = x[0:1, :]
    for c in range(1, C):
        m = jnp.maximum(m, x[c:c + 1, :])

    # Sum of exponentials + gather of the target-class logit, unrolled over C.
    sum_e = jnp.zeros_like(m)
    x_t = jnp.zeros_like(m)
    for c in range(C):
        row = x[c:c + 1, :]
        sum_e = sum_e + jnp.exp(row - m)
        x_t = jnp.where(t == c, row, x_t)

    # log-softmax at the target class (no log(exp(..)) round-trip, no NaN from
    # underflowed probabilities).
    log_p = x_t - m - jnp.log(sum_e)               # (1, tile_p)
    weight = jnp.exp(jnp.float32(gamma) * log_p)   # == probs**gamma, one EUP exp
    loss = -weight * log_p                         # (1, tile_p)

    # Mask padded lanes of a ragged last pixel tile (keeps garbage/NaN out of
    # the accumulator).
    lane = jax.lax.broadcasted_iota(jnp.int32, loss.shape, 1) + p * tile_p
    loss = jnp.where(lane < hw, loss, 0.0)

    acc_ref[...] += loss

    @pl.when(is_last)
    def _():
        total = jnp.sum(acc_ref[...])              # single cross-lane reduce
        if size_average:
            total = total * jnp.float32(inv_m)     # divide by GLOBAL N*H*W
        out_ref[0, 0] = total


class FocalLossReversePallas:
    """Pallas TPU port of FocalLoss_Reverse (softmax branch, reduce=True)."""

    # Pixels per grid step.  At C=4 f32 this is ~128 KiB per x buffer
    # (double-buffered), comfortably inside v5e's 16 MiB scoped VMEM default
    # and v7x's 64 MiB physical VMEM while still amortizing per-step overhead.
    _TILE_MAX = 8 * 1024

    def __init__(self, class_num, alpha=None, gamma=2, size_average=True,
                 sigmoid=False, reduce=True):
        if alpha is None:
            # Matches torch.ones(class_num, 1); alpha is never applied in the
            # softmax branch of the reference forward pass, so it is unused.
            self.alpha = jnp.ones((class_num, 1), dtype=jnp.float32)
        else:
            self.alpha = alpha
        self.gamma = gamma
        self.class_num = class_num
        self.size_average = size_average
        self.sigmoid = sigmoid
        self.reduce = reduce
        # TODO(synk): sigmoid=True branch (ill-defined `if targets == 0` on a
        # tensor in the reference) and reduce=False (per-pixel output) are not
        # implemented; module defaults (sigmoid=False, reduce=True) are.

    def __call__(self, inputs, targets):
        if self.sigmoid or not self.reduce:
            raise NotImplementedError(
                "only the sigmoid=False, reduce=True branch is implemented")

        N, C, H, W = inputs.shape
        HW = H * W
        M = N * HW

        # View-only reshapes — keep NCHW layout, pixels on the lane axis.
        x3d = inputs.reshape(N, C, HW).astype(jnp.float32)      # (N, C, HW)
        t3d = targets.reshape(N, 1, HW).astype(jnp.int32)       # (N, 1, HW)

        if HW <= self._TILE_MAX:
            tile_p = HW                     # full dim: always a legal block
            num_p = 1
        else:
            tile_p = self._TILE_MAX         # multiple of 128
            num_p = pl.cdiv(HW, tile_p)

        kernel = functools.partial(
            _focal_reverse_kernel,
            gamma=float(self.gamma), C=C, tile_p=tile_p, hw=HW,
            inv_m=1.0 / float(M), size_average=self.size_average)

        out = pl.pallas_call(
            kernel,
            out_shape=jax.ShapeDtypeStruct((1, 1), jnp.float32),
            grid_spec=pltpu.PrefetchScalarGridSpec(
                num_scalar_prefetch=0,
                grid=(N, num_p),
                in_specs=[
                    pl.BlockSpec((1, C, tile_p), lambda n, p: (n, 0, p)),
                    pl.BlockSpec((1, 1, tile_p), lambda n, p: (n, 0, p)),
                ],
                out_specs=pl.BlockSpec(memory_space=pltpu.SMEM),
                scratch_shapes=[pltpu.VMEM((1, tile_p), jnp.float32)],
            ),
            compiler_params=pltpu.CompilerParams(
                # A single shared accumulator makes every grid axis a
                # sequential reduction axis.
                dimension_semantics=("arbitrary", "arbitrary")),
        )(x3d, t3d)
        return out[0, 0]


def _reference(inputs, targets, gamma=2):
    # pure-JAX reference of the softmax / reduce / size_average branch
    p = jax.nn.softmax(inputs.astype(jnp.float32), axis=1)       # (N,C,H,W)
    onehot = jax.nn.one_hot(targets, inputs.shape[1], axis=1)    # (N,C,H,W)
    probs = jnp.sum(p * onehot, axis=1)                          # (N,H,W)
    batch_loss = -jnp.power(probs, gamma) * jnp.log(probs)
    return jnp.mean(batch_loss)


if __name__ == "__main__":
    key = jax.random.PRNGKey(0)
    kx, kt = jax.random.split(key)
    N, C, H, W = 2, 4, 16, 16
    x = jax.random.normal(kx, (N, C, H, W), dtype=jnp.float32)
    targets = jax.random.randint(kt, (N, H, W), 0, C, dtype=jnp.int32)

    loss_fn = FocalLossReversePallas(class_num=C, gamma=2)
    loss = loss_fn(x, targets)
    loss = jax.block_until_ready(loss)

    ref = _reference(x, targets, gamma=2)
    assert jnp.allclose(loss, ref, rtol=1e-5, atol=1e-6), (loss, ref)
    print("KERNEL_OK")
</pallas_src>

<mosaic_0001>
module attributes {stable_mosaic.version = 11 : i64} {
  func.func @_focal_reverse_kernel(%arg0: i32, %arg1: i32, %arg2: memref<1x4x256xf32, #tpu.memory_space<vmem>>, %arg3: memref<1x1x256xi32, #tpu.memory_space<vmem>>, %arg4: memref<1x1xf32, #tpu.memory_space<smem>>, %arg5: memref<1x256xf32, #tpu.memory_space<vmem>>) attributes {dimension_semantics = [#tpu.dimension_semantics<arbitrary>, #tpu.dimension_semantics<arbitrary>], iteration_bounds = array<i64: 2, 1>, scalar_prefetch = 0 : i64, scratch_operands = 1 : i64, tpu.core_type = #tpu.core_type<tc>, window_params = [{transform_indices = @transform_0, window_bounds = array<i64: 1, 4, 256>}, {transform_indices = @transform_1, window_bounds = array<i64: 1, 1, 256>}, {transform_indices = @transform_2, window_bounds = array<i64: 1, 1>}]} {
    %c0_i32 = arith.constant 0 : i32
    %0 = arith.cmpi eq, %arg0, %c0_i32 : i32
    %c0_i32_0 = arith.constant 0 : i32
    %1 = arith.cmpi eq, %arg1, %c0_i32_0 : i32
    %2 = arith.andi %0, %1 : i1
    %c1_i32 = arith.constant 1 : i32
    %3 = arith.cmpi eq, %arg0, %c1_i32 : i32
    %c0_i32_1 = arith.constant 0 : i32
    %4 = arith.cmpi eq, %arg1, %c0_i32_1 : i32
    %5 = arith.andi %3, %4 : i1
    %6 = arith.extui %2 : i1 to i32
    %c0_i32_2 = arith.constant 0 : i32
    %7 = arith.cmpi ne, %6, %c0_i32_2 : i32
    scf.if %7 {
      %cst_20 = arith.constant 0.000000e+00 : f32
      %71 = vector.broadcast %cst_20 : f32 to vector<1x256xf32>
      %c0_21 = arith.constant 0 : index
      %c0_22 = arith.constant 0 : index
      %72 = vector.load %arg5[%c0_21, %c0_22] : memref<1x256xf32, #tpu.memory_space<vmem>>, vector<1x256xf32>
      tpu.vector_store %arg5[%c0_21, %c0_22], %71 {strides = array<i32>} : memref<1x256xf32, #tpu.memory_space<vmem>>, vector<1x256xf32>,
    } else {
    }
    %c0 = arith.constant 0 : index
    %c0_3 = arith.constant 0 : index
    %c0_4 = arith.constant 0 : index
    %8 = vector.load %arg2[%c0, %c0_3, %c0_4] : memref<1x4x256xf32, #tpu.memory_space<vmem>>, vector<1x4x256xf32>
    %9 = vector.shape_cast %8 : vector<1x4x256xf32> to vector<4x256xf32>
    %c0_5 = arith.constant 0 : index
    %c0_6 = arith.constant 0 : index
    %c0_7 = arith.constant 0 : index
    %10 = vector.load %arg3[%c0_5, %c0_6, %c0_7] : memref<1x1x256xi32, #tpu.memory_space<vmem>>, vector<1x1x256xi32>
    %11 = vector.shape_cast %10 : vector<1x1x256xi32> to vector<1x256xi32>
    %12 = vector.extract_strided_slice %9 {offsets = [0, 0], sizes = [1, 256], strides = [1, 1]} : vector<4x256xf32> to vector<1x256xf32>
    %13 = vector.extract_strided_slice %9 {offsets = [1, 0], sizes = [1, 256], strides = [1, 1]} : vector<4x256xf32> to vector<1x256xf32>
    %14 = arith.maximumf %12, %13 : vector<1x256xf32>
    %15 = vector.extract_strided_slice %9 {offsets = [2, 0], sizes = [1, 256], strides = [1, 1]} : vector<4x256xf32> to vector<1x256xf32>
    %16 = arith.maximumf %14, %15 : vector<1x256xf32>
    %17 = vector.extract_strided_slice %9 {offsets = [3, 0], sizes = [1, 256], strides = [1, 1]} : vector<4x256xf32> to vector<1x256xf32>
    %18 = arith.maximumf %16, %17 : vector<1x256xf32>
    %cst = arith.constant 0.000000e+00 : f32
    %19 = vector.broadcast %cst : f32 to vector<1x256xf32>
    %cst_8 = arith.constant 0.000000e+00 : f32
    %20 = vector.broadcast %cst_8 : f32 to vector<1x256xf32>
    %21 = vector.extract_strided_slice %9 {offsets = [0, 0], sizes = [1, 256], strides = [1, 1]} : vector<4x256xf32> to vector<1x256xf32>
    %22 = arith.subf %21, %18 : vector<1x256xf32>
    %23 = math.exp %22 : vector<1x256xf32>
    %24 = arith.addf %19, %23 : vector<1x256xf32>
    %c0_i32_9 = arith.constant 0 : i32
    %25 = vector.broadcast %c0_i32_9 : i32 to vector<1x256xi32>
    %26 = arith.cmpi eq, %11, %25 : vector<1x256xi32>
    %27 = arith.select %26, %21, %20 : vector<1x256xi1>, vector<1x256xf32>
    %28 = vector.extract_strided_slice %9 {offsets = [1, 0], sizes = [1, 256], strides = [1, 1]} : vector<4x256xf32> to vector<1x256xf32>
    %29 = arith.subf %28, %18 : vector<1x256xf32>
    %30 = math.exp %29 : vector<1x256xf32>
    %31 = arith.addf %24, %30 : vector<1x256xf32>
    %c1_i32_10 = arith.constant 1 : i32
    %32 = vector.broadcast %c1_i32_10 : i32 to vector<1x256xi32>
    %33 = arith.cmpi eq, %11, %32 : vector<1x256xi32>
    %34 = arith.select %33, %28, %27 : vector<1x256xi1>, vector<1x256xf32>
    %35 = vector.extract_strided_slice %9 {offsets = [2, 0], sizes = [1, 256], strides = [1, 1]} : vector<4x256xf32> to vector<1x256xf32>
    %36 = arith.subf %35, %18 : vector<1x256xf32>
    %37 = math.exp %36 : vector<1x256xf32>
    %38 = arith.addf %31, %37 : vector<1x256xf32>
    %c2_i32 = arith.constant 2 : i32
    %39 = vector.broadcast %c2_i32 : i32 to vector<1x256xi32>
    %40 = arith.cmpi eq, %11, %39 : vector<1x256xi32>
    %41 = arith.select %40, %35, %34 : vector<1x256xi1>, vector<1x256xf32>
    %42 = vector.extract_strided_slice %9 {offsets = [3, 0], sizes = [1, 256], strides = [1, 1]} : vector<4x256xf32> to vector<1x256xf32>
    %43 = arith.subf %42, %18 : vector<1x256xf32>
    %44 = math.exp %43 : vector<1x256xf32>
    %45 = arith.addf %38, %44 : vector<1x256xf32>
    %c3_i32 = arith.constant 3 : i32
    %46 = vector.broadcast %c3_i32 : i32 to vector<1x256xi32>
    %47 = arith.cmpi eq, %11, %46 : vector<1x256xi32>
    %48 = arith.select %47, %42, %41 : vector<1x256xi1>, vector<1x256xf32>
    %49 = arith.subf %48, %18 : vector<1x256xf32>
    %50 = math.log %45 : vector<1x256xf32>
    %51 = arith.subf %49, %50 : vector<1x256xf32>
    %cst_11 = arith.constant 2.000000e+00 : f32
    %52 = vector.broadcast %cst_11 : f32 to vector<1x256xf32>
    %53 = arith.mulf %52, %51 : vector<1x256xf32>
    %54 = math.exp %53 : vector<1x256xf32>
    %cst_12 = arith.constant 0.000000e+00 : f32
    %55 = vector.broadcast %cst_12 : f32 to vector<1x256xf32>
    %56 = arith.subf %55, %54 : vector<1x256xf32>
    %57 = arith.mulf %56, %51 : vector<1x256xf32>
    %58 = tpu.iota {dimensions = array<i32: 1>} : vector<1x256xi32>
    %c256_i32 = arith.constant 256 : i32
    %59 = arith.muli %arg1, %c256_i32 : i32
    %60 = vector.broadcast %59 : i32 to vector<1x256xi32>
    %61 = arith.addi %58, %60 : vector<1x256xi32>
    %c256_i32_13 = arith.constant 256 : i32
    %62 = vector.broadcast %c256_i32_13 : i32 to vector<1x256xi32>
    %63 = arith.cmpi slt, %61, %62 : vector<1x256xi32>
    %cst_14 = arith.constant 0.000000e+00 : f32
    %64 = vector.broadcast %cst_14 : f32 to vector<1x256xf32>
    %65 = arith.select %63, %57, %64 : vector<1x256xi1>, vector<1x256xf32>
    %c0_15 = arith.constant 0 : index
    %c0_16 = arith.constant 0 : index
    %66 = vector.load %arg5[%c0_15, %c0_16] : memref<1x256xf32, #tpu.memory_space<vmem>>, vector<1x256xf32>
    %67 = arith.addf %66, %65 : vector<1x256xf32>
    %c0_17 = arith.constant 0 : index
    %c0_18 = arith.constant 0 : index
    %68 = vector.load %arg5[%c0_17, %c0_18] : memref<1x256xf32, #tpu.memory_space<vmem>>, vector<1x256xf32>
    tpu.vector_store %arg5[%c0_17, %c0_18], %67 {strides = array<i32>} : memref<1x256xf32, #tpu.memory_space<vmem>>, vector<1x256xf32>,
    %69 = arith.extui %5 : i1 to i32
    %c0_i32_19 = arith.constant 0 : i32
    %70 = arith.cmpi ne, %69, %c0_i32_19 : i32
    scf.if %70 {
      %c0_20 = arith.constant 0 : index
      %c0_21 = arith.constant 0 : index
      %71 = vector.load %arg5[%c0_20, %c0_21] : memref<1x256xf32, #tpu.memory_space<vmem>>, vector<1x256xf32>
      %72 = vector.shape_cast %71 : vector<1x256xf32> to vector<1x1x256xf32>
      %cst_22 = arith.constant dense<0.000000e+00> : vector<1xf32>
      %73 = vector.multi_reduction <add>, %72, %cst_22 [1, 2] : vector<1x1x256xf32> to vector<1xf32>
      %74 = vector.shape_cast %73 : vector<1xf32> to vector<1x1x1xf32>
      %75 = vector.extract %74[0, 0, 0] : f32 from vector<1x1x1xf32>
      %cst_23 = arith.constant 0.001953125 : f32
      %76 = arith.mulf %75, %cst_23 : f32
      %c0_24 = arith.constant 0 : index
      %c0_25 = arith.constant 0 : index
      %77 = memref.load %arg4[%c0_24, %c0_25] : memref<1x1xf32, #tpu.memory_space<smem>>
      memref.store %76, %arg4[%c0_24, %c0_25] : memref<1x1xf32, #tpu.memory_space<smem>>
    } else {
    }
    return
  }
  func.func @transform_0(%arg0: i32, %arg1: i32) -> (i32, i32, i32) {
    %c0_i32 = arith.constant 0 : i32
    %c0_i32_0 = arith.constant 0 : i32
    return %arg0, %c0_i32, %arg1 : i32, i32, i32
  }
  func.func @transform_1(%arg0: i32, %arg1: i32) -> (i32, i32, i32) {
    %c0_i32 = arith.constant 0 : i32
    %c0_i32_0 = arith.constant 0 : i32
    return %arg0, %c0_i32, %arg1 : i32, i32, i32
  }
  func.func @transform_2(%arg0: i32, %arg1: i32) -> (i32, i32) {
    %c0_i32 = arith.constant 0 : i32
    %c0_i32_0 = arith.constant 0 : i32
    %c0_i32_1 = arith.constant 0 : i32
    return %c0_i32, %c0_i32_0 : i32, i32
  }
}

</mosaic_0001>

<llo_original>
// kernel: tpu_custom_call.1
$region0: #{tpu_custom_call.1}
  #allocation0 [shape = 'u32[]', space=smem, size = 0x4, offset = 0x4, fixed_abs, tag = 'smem constant byte address 0x4 - core index']
  #allocation1 [shape = 'u32[144,128]{1,0:T(1,128)}', space=vmem, size = 0x12000, scoped, tag = 'internal scratch']
  #allocation2 [shape = 'f32[1,256]{1,0:T(1,128)}', space=vmem, size = 0x400, scoped, tag = 'scratch operand']
  %s0 = inlined_call_operand.hbm [shape: f32[2,4,256], index: 0, kind: input, shape index: {}]
  %s1 = inlined_call_operand.hbm [shape: s32[2,1,256], index: 1, kind: input, shape index: {}]
  %s2 = inlined_call_operand.hbm [shape: f32[1,1], index: 2, kind: output, shape index: {}]
  %s3 = sld [smem:[#allocation0]]
  $region57: #{tpu_custom_call.1} parent=0
    _
  %s5 = ssub.s32 1, %s3
  %s6 = scalar_select 0, %s5, %s3
  $region1: #{tpu_custom_call.1} parent=0
    #allocation3 [shape = 'u8[8192]{0}', space=vmem, size = 0x2000, scoped, tag = 'input window, operand 0']
    #allocation4 [shape = 's32[2]{0}', space=sflag, size = 0x8, scoped, tag = 'scoped memory for tpu_custom_call.1']
    #allocation5 [shape = 's32[2]{0}', space=sflag, size = 0x8, scoped, tag = 'scoped memory for tpu_custom_call.1']
    #allocation6 [shape = 'u8[2048]{0}', space=vmem, size = 0x800, scoped, tag = 'input window, operand 1']
    #allocation7 [shape = 's32[2]{0}', space=sflag, size = 0x8, scoped, tag = 'scoped memory for tpu_custom_call.1']
    #allocation8 [shape = 'u8[512]{0}', space=smem, size = 0x200, scoped, tag = 'output window, operand 0, single buffered']
    %7 = vsyncpa [#allocation4], 0
    %s8 = scalar_lea.sflag [#allocation4], 1
    %9 = vsyncpa %s8, 0
    %10 = vsyncpa [#allocation7], 0
    %s11 = scalar_lea.sflag [#allocation7], 1
    %12 = vsyncpa %s11, 0
    %13 = vsyncpa [#allocation5], 0
    loop: start=0, step=1, limit=4
    $region2: #{tpu_custom_call.1} parent=1 // loop_pre_header
      _
    $region3: #{tpu_custom_call.1} parent=1 // loop_header
      %s15 = sphi 0, %s19
      %p16 = scmp.ge.s32.totalorder %s15, 4
      %s22 = sphi 0, %s34
      %s23 = sphi 0, %s30
      %s24 = sphi 0, %s22
      %s25 = sphi 0, %s23
      %s26 = sphi 0, %s24
      %s27 = sphi 0, %s25
      %s39 = sphi 0, %s41
      %s42 = sphi 0, %s39
      %s43 = sphi 0, %s42
      %s59 = sphi 0, %s43
      %s67 = sphi 0, %s69
      %s70 = sphi 0, %s67
      %s71 = sphi 0, %s70
      %s87 = sphi 0, %s71
      %s91 = sphi 0, %s91
      %s93 = sphi 0, %s91
      %s94 = sphi 0, %s93
      %s108 = sphi 0, %s94
    $region4: #{tpu_custom_call.1} parent=1 // loop_header_branch
      %18 = sbr.rel (%p16) target = $region8
    $region5: #{tpu_custom_call.1} parent=1 // loop_body
      %s20 = ssub.s32 %s15, 1
      %s21 = ssub.s32 %s15, 2
      %s28 = sadd.s32 1, %s23
      %p29 = scmp.ge.s32.totalorder %s28, 1
      %s30 = scalar_select %p29, 0, %s28
      %s31 = sadd.s32 1, %s22
      %s32 = scalar_select %p29, %s31, %s22
      %p33 = scmp.ge.s32.totalorder %s32, 2
      %s34 = scalar_select %p33, 0, %s32
      %s35 = ssub.s32 %s22, %s34
      %s36 = ssub.s32 %s23, %s30
      %s37 = sor.u32 %s35, %s36
      %p38 = scmp.eq.s32.totalorder %s37, 0
      %s40 = sadd.s32 %s39, 1
      %s41 = scalar_select %p38, %s39, %s40
      %p44 = pneg %p38
      %p45 = scmp.eq.s32.totalorder %s15, 1
      %p46 = por %p44, %p45
      %p47 = scmp.ne.s32.totalorder %s39, %s42
      %p48 = scmp.eq.s32.totalorder %s15, 0
      %p49 = por %p47, %p48
      %p50 = scmp.ne.s32.totalorder %s39, %s42
      %p51 = scmp.eq.s32.totalorder %s20, 1
      %p52 = por %p50, %p51
      %p53 = scmp.ne.s32.totalorder %s42, %s43
      %p54 = scmp.eq.s32.totalorder %s20, 0
      %p55 = por %p53, %p54
      %p56 = scmp.ne.s32.totalorder %s42, %s43
      %p57 = scmp.eq.s32.totalorder %s21, 1
      %p58 = por %p56, %p57
      %p60 = scmp.ne.s32.totalorder %s43, %s59
      %p61 = scmp.eq.s32.totalorder %s21, 0
      %p62 = por %p60, %p61
      %s63 = ssub.s32 %s22, %s34
      %s64 = ssub.s32 %s23, %s30
      %s65 = sor.u32 %s63, %s64
      %p66 = scmp.eq.s32.totalorder %s65, 0
      %s68 = sadd.s32 %s67, 1
      %s69 = scalar_select %p66, %s67, %s68
      %p72 = pneg %p66
      %p73 = scmp.eq.s32.totalorder %s15, 1
      %p74 = por %p72, %p73
      %p75 = scmp.ne.s32.totalorder %s67, %s70
      %p76 = scmp.eq.s32.totalorder %s15, 0
      %p77 = por %p75, %p76
      %p78 = scmp.ne.s32.totalorder %s67, %s70
      %p79 = scmp.eq.s32.totalorder %s20, 1
      %p80 = por %p78, %p79
      %p81 = scmp.ne.s32.totalorder %s70, %s71
      %p82 = scmp.eq.s32.totalorder %s20, 0
      %p83 = por %p81, %p82
      %p84 = scmp.ne.s32.totalorder %s70, %s71
      %p85 = scmp.eq.s32.totalorder %s21, 1
      %p86 = por %p84, %p85
      %p88 = scmp.ne.s32.totalorder %s71, %s87
      %p89 = scmp.eq.s32.totalorder %s21, 0
      %p90 = por %p88, %p89
      %s92 = sadd.s32 %s91, 1
      %p95 = scmp.eq.s32.totalorder %s15, 1
      %p96 = scmp.ne.s32.totalorder %s91, %s93
      %p97 = scmp.eq.s32.totalorder %s15, 0
      %p98 = por %p96, %p97
      %p99 = scmp.ne.s32.totalorder %s91, %s93
      %p100 = scmp.eq.s32.totalorder %s20, 1
      %p101 = por %p99, %p100
      %p102 = scmp.ne.s32.totalorder %s93, %s94
      %p103 = scmp.eq.s32.totalorder %s20, 0
      %p104 = por %p102, %p103
      %p105 = scmp.ne.s32.totalorder %s93, %s94
      %p106 = scmp.eq.s32.totalorder %s21, 1
      %p107 = por %p105, %p106
      %p109 = scmp.ne.s32.totalorder %s94, %s108
      %p110 = scmp.eq.s32.totalorder %s21, 0
      %p111 = por %p109, %p110
      %p112 = scmp.le.s32.totalorder 1, %s15
      %p113 = scmp.lt.s32.totalorder %s15, 3
      %p114 = pnand %p112, %p113
      %p115 = pneg %p114
      // Predicated region
      $region9: #{tpu_custom_call.1} parent=5 // pred_check
        _
      $region10: #{tpu_custom_call.1} parent=5 // pred_check_branch
        %117 = sbr.rel (%p114) target = $region12
      $region11: #{tpu_custom_call.1} parent=5 // pred_region
        %s118 = ssub.s32 %s15, 1
      $region12: #{tpu_custom_call.1} parent=5 // pred_fallthru
        _
      %p119 = scmp.lt.s32.totalorder %s15, 2
      // Predicated region
      $region13: #{tpu_custom_call.1} parent=5 // pred_check
        %p120 = pneg %p119
      $region14: #{tpu_custom_call.1} parent=5 // pred_check_branch
        %122 = sbr.rel (%p120) target = $region16
      $region15: #{tpu_custom_call.1} parent=5 // pred_region
        // Predicated region
        $region17: #{tpu_custom_call.1} parent=15 // pred_check
          %p123 = pneg %p49
        $region18: #{tpu_custom_call.1} parent=15 // pred_check_branch
          %125 = sbr.rel (%p123) target = $region20
        $region19: #{tpu_custom_call.1} parent=15 // pred_region
          %s126 = sand.u32 %s39, 1
          %s127 = scalar_lea.sflag [#allocation4], %s126
          %s128 = sand.u32 %s39, 1
          %s129 = smul.addr %s128, 8
          %s130 = scalar_lea.vmem [#allocation3], %s129
          %s131 = smul.u32 2, %s23
          %s133 = ssub.s32 128, 128
          %134 = vsyncadd %s127, %s133
          %s135 = smul.addr %s22, 2
          %s136 = sadd.s32 %s131, %s135
          %s137 = smul.addr %s136, 64
          %s138 = scalar_lea.hbm %s0, %s137
          %s140 = sshll.u32 %s130, 4
          %s141 = int_to_ptr.vmem [resolvable:$true] %s140
          %143 = dma.hbm_to_vmem [thread:$0]  %s138, 128, %s141, %s127
        $region20: #{tpu_custom_call.1} parent=15 // pred_fallthru
          _
        // Predicated region
        $region21: #{tpu_custom_call.1} parent=15 // pred_check
          %p144 = pneg %p77
        $region22: #{tpu_custom_call.1} parent=15 // pred_check_branch
          %146 = sbr.rel (%p144) target = $region24
        $region23: #{tpu_custom_call.1} parent=15 // pred_region
          %s147 = sand.u32 %s67, 1
          %s148 = scalar_lea.sflag [#allocation7], %s147
          %s149 = sand.u32 %s67, 1
          %s150 = smul.addr %s149, 2
          %s151 = scalar_lea.vmem [#allocation6], %s150
          %s152 = smul.u32 2, %s23
          %s154 = ssub.s32 32, 32
          %155 = vsyncadd %s148, %s154
          %s156 = smul.addr %s22, 2
          %s157 = sadd.s32 %s152, %s156
          %s158 = smul.addr %s157, 16
          %s159 = scalar_lea.hbm %s1, %s158
          %s161 = sshll.u32 %s151, 4
          %s162 = int_to_ptr.vmem [resolvable:$true] %s161
          %164 = dma.hbm_to_vmem [thread:$0]  %s159, 32, %s162, %s148
        $region24: #{tpu_custom_call.1} parent=15 // pred_fallthru
          _
      $region16: #{tpu_custom_call.1} parent=5 // pred_fallthru
        _
      %p165 = scmp.le.s32.totalorder 1, %s15
      %p166 = scmp.lt.s32.totalorder %s15, 3
      %p167 = pnand %p165, %p166
      %p168 = pneg %p167
      // Predicated region
      $region25: #{tpu_custom_call.1} parent=5 // pred_check
        _
      $region26: #{tpu_custom_call.1} parent=5 // pred_check_branch
        %170 = sbr.rel (%p167) target = $region28
      $region27: #{tpu_custom_call.1} parent=5 // pred_region
        %s171 = ssub.s32 %s15, 1
        %s172 = sand.u32 %s42, 1
        %s173 = scalar_lea.sflag [#allocation4], %s172
        %s174 = sand.u32 %s42, 1
        %s175 = smul.addr %s174, 8
        %s176 = scalar_lea.vmem [#allocation3], %s175
        // Predicated region
        $region29: #{tpu_custom_call.1} parent=27 // pred_check
          %p177 = pneg %p55
        $region30: #{tpu_custom_call.1} parent=27 // pred_check_branch
          %179 = sbr.rel (%p177) target = $region32
        $region31: #{tpu_custom_call.1} parent=27 // pred_region
          %180 = dma.done %s173, 128
        $region32: #{tpu_custom_call.1} parent=27 // pred_fallthru
          _
        %s181 = sand.u32 %s70, 1
        %s182 = scalar_lea.sflag [#allocation7], %s181
        %s183 = sand.u32 %s70, 1
        %s184 = smul.addr %s183, 2
        %s185 = scalar_lea.vmem [#allocation6], %s184
        // Predicated region
        $region33: #{tpu_custom_call.1} parent=27 // pred_check
          %p186 = pneg %p83
        $region34: #{tpu_custom_call.1} parent=27 // pred_check_branch
          %188 = sbr.rel (%p186) target = $region36
        $region35: #{tpu_custom_call.1} parent=27 // pred_region
          %189 = dma.done %s182, 32
        $region36: #{tpu_custom_call.1} parent=27 // pred_fallthru
          _
        %s190 = sand.u32 %s42, 1
        %s191 = scalar_lea.sflag [#allocation4], %s190
        %s192 = sand.u32 %s42, 1
        %s193 = smul.addr %s192, 8
        %s194 = scalar_lea.vmem [#allocation3], %s193
        %p195 = pneg %p55
        %p196 = pneg %p52
        %s197 = sand.u32 %s70, 1
        %s198 = scalar_lea.sflag [#allocation7], %s197
        %s199 = sand.u32 %s70, 1
        %s200 = smul.addr %s199, 2
        %s201 = scalar_lea.vmem [#allocation6], %s200
        %p202 = pneg %p83
        %p203 = pneg %p80
        %p204 = pneg %p104
        %p205 = pneg %p101
        %s206 = smul.u32 2, %s25
        %s207 = smul.u32 2, %s25
        %p208 = scmp.eq.s32.totalorder %s24, 0
        %p209 = scmp.eq.s32.totalorder %s25, 0
        %p210 = pnand %p208, %p209
        %p211 = pneg %p210
        %p212 = scmp.eq.s32.totalorder %s24, 1
        %p213 = pnand %p212, %p209
        %p214 = pneg %p213
        // Predicated region
        $region37: #{tpu_custom_call.1} parent=27 // pred_check
          _
        $region38: #{tpu_custom_call.1} parent=27 // pred_check_branch
          %216 = sbr.rel (%p210) target = $region40
        $region39: #{tpu_custom_call.1} parent=27 // pred_region
          %v217 = vlaneseq
          %vm218 = vcmp.ge.s32.totalorder %v217, 0
          %vm219 = vcmp.lt.s32.totalorder %v217, 256
          %vm220 = vmand %vm218, %vm219
          %221 = vst.msk [vmem:[#allocation2] sm:$0x3] %vm220, 0.0
        $region40: #{tpu_custom_call.1} parent=27 // pred_fallthru
          _
        %v222 = vld [vmem:[%s176] sm:$0xff]
        %v223 = vld [vmem:[%s185] sm:$0x3]
        %v225 = vrot.slane %v222, 5
        %v226 = vrot.slane %v225, 4
        %v228 = vmax.f32 %v222, %v226
        %v229 = vrot.slane %v222, 6
        %v230 = vrot.slane %v229, 4
        %v232 = vmax.f32 %v228, %v230
        %v233 = vrot.slane %v222, 7
        %v234 = vrot.slane %v233, 4
        %v236 = vmax.f32 %v232, %v234
        %v237 = vsub.f32 %v222, %v236
        %v238 = vmul.f32 %v237, 1.442695
        %v239 = vpow.pop %v238
        %v240 = vadd.f32 %v239, 0.0
        %vm241 = vcmp.eq.s32.totalorder %v223, 0
        %v243 = vunpack.c.l.s4 1966171168
        %v244 = vunpack.c.0.s8 %v243
        %v245 = vlaneseq
        %v246 = vshrl.u32 %v245, 7
        %v247 = vsub.s32 %v244, %v246
        %v248 = vrot.slane %v222, %v247
        %v250 = vunpack.c.l.s4 1966171168
        %v251 = vunpack.c.0.s8 %v250
        %v252 = vlaneseq
        %v253 = vshrl.u32 %v252, 7
        %v254 = vsub.s32 %v251, %v253
        %v255 = vrot.slane %v248, %v254
        %v257 = vsel %vm241, %v255, 0.0
        %v259 = vrot.slane %v236, 7
        %v261 = vsub.f32 %v222, %v259
        %v262 = vmul.f32 %v261, 1.442695
        %v263 = vpow.pop %v262
        %v265 = vrot.slane %v263, 5
        %v266 = vrot.slane %v265, 4
        %v268 = vadd.f32 %v240, %v266
        %vm269 = vcmp.eq.s32.totalorder %v223, 1
        %v270 = vcombine.high %v248, %v248
        %v272 = vunpack.c.l.s4 1966171168
        %v273 = vunpack.c.0.s8 %v272
        %v274 = vlaneseq
        %v275 = vshrl.u32 %v274, 7
        %v276 = vsub.s32 %v273, %v275
        %v277 = vrot.slane %v270, %v276
        %v279 = vsel %vm269, %v277, %v257
        %v280 = vrot.slane %v236, 6
        %v282 = vsub.f32 %v222, %v280
        %v283 = vmul.f32 %v282, 1.442695
        %v284 = vpow.pop %v283
        %v286 = vrot.slane %v284, 6
        %v287 = vrot.slane %v286, 4
        %v289 = vadd.f32 %v268, %v287
        %vm290 = vcmp.eq.s32.totalorder %v223, 2
        %v291 = vcombine.high %v255, %v255
        %v293 = vsel %vm290, %v291, %v279
        %v294 = vrot.slane %v236, 5
        %v296 = vsub.f32 %v222, %v294
        %v297 = vmul.f32 %v296, 1.442695
        %v298 = vpow.pop %v297
        %v300 = vrot.slane %v298, 7
        %v301 = vrot.slane %v300, 4
        %v303 = vadd.f32 %v289, %v301
        %vm304 = vcmp.eq.s32.totalorder %v223, 3
        %v305 = vcombine.high %v277, %v277
        %v307 = vsel %vm304, %v305, %v293
        %v309 = vunpack.c.l.s4 1966171168
        %v310 = vunpack.c.0.s8 %v309
        %v311 = vlaneseq
        %v312 = vshrl.u32 %v311, 7
        %v313 = vsub.s32 %v310, %v312
        %v314 = vrot.slane %v236, %v313
        %v316 = vunpack.c.l.s4 1966171168
        %v317 = vunpack.c.0.s8 %v316
        %v318 = vlaneseq
        %v319 = vshrl.u32 %v318, 7
        %v320 = vsub.s32 %v317, %v319
        %v321 = vrot.slane %v314, %v320
        %v323 = vsub.f32 %v307, %v321
        %v324 = vlog2.pop %v303
        %v325 = vmul.f32 %v324, 0.6931472
        %v328 = vunpack.c.l.s4 1966171168
        %v329 = vunpack.c.0.s8 %v328
        %v330 = vlaneseq
        %v331 = vshrl.u32 %v330, 7
        %v332 = vsub.s32 %v329, %v331
        %v333 = vrot.slane %v325, %v332
        %v335 = vunpack.c.l.s4 1966171168
        %v336 = vunpack.c.0.s8 %v335
        %v337 = vlaneseq
        %v338 = vshrl.u32 %v337, 7
        %v339 = vsub.s32 %v336, %v338
        %v340 = vrot.slane %v333, %v339
        %v342 = vsub.f32 %v323, %v340
        %v343 = vmul.f32 %v342, 2.0
        %v344 = vmul.f32 %v343, 1.442695
        %v345 = vpow.pop %v344
        %v346 = vsub.f32 0.0, %v345
        %v347 = vmul.f32 %v346, %v342
        %v348 = vlaneseq
        %v349 = vand.u32 %v348, 127
        %v350 = vadd.s32 %v349, 128
        %s351 = smul.u32 %s25, 256
        %v352 = vstv %s351
        %v353 = vadd.s32 %v349, %v352
        %v354 = vadd.s32 %v350, %v352
        %vm355 = vcmp.lt.s32.totalorder %v353, 256
        %vm356 = vcmp.lt.s32.totalorder %v354, 256
        %v358 = vlaneseq
        %v359 = vshrl.u32 %v358, 7
        %v360 = vsub.s32 0, %v359
        %v361 = vrot.slane %v347, %v360
        %v362 = vlaneseq
        %v363 = vshrl.u32 %v362, 7
        %v364 = vsub.s32 1, %v363
        %v365 = vrot.slane %v347, %v364
        %v368 = vsel %vm355, %v361, 0.0
        %v369 = vsel %vm356, %v365, 0.0
        %v370 = vld [vmem:[#allocation2] sm:$0x3]
        %v373 = vcombine.low %v368, %v369
        %v375 = vunpack.c.l.s4 1966171168
        %v376 = vunpack.c.0.s8 %v375
        %v377 = vlaneseq
        %v378 = vshrl.u32 %v377, 7
        %v379 = vsub.s32 %v376, %v378
        %v380 = vrot.slane %v373, %v379
        %v382 = vunpack.c.l.s4 1966171168
        %v383 = vunpack.c.0.s8 %v382
        %v384 = vlaneseq
        %v385 = vshrl.u32 %v384, 7
        %v386 = vsub.s32 %v383, %v385
        %v387 = vrot.slane %v380, %v386
        %v389 = vadd.f32 %v370, %v387
        %v390 = vlaneseq
        %vm391 = vcmp.ge.s32.totalorder %v390, 0
        %vm392 = vcmp.lt.s32.totalorder %v390, 256
        %vm393 = vmand %vm391, %vm392
        %394 = vst.msk [vmem:[#allocation2] sm:$0x3] %vm393, %v389
        // Predicated region
        $region41: #{tpu_custom_call.1} parent=27 // pred_check
          _
        $region42: #{tpu_custom_call.1} parent=27 // pred_check_branch
          %396 = sbr.rel (%p213) target = $region44
        $region43: #{tpu_custom_call.1} parent=27 // pred_region
          %v397 = vld [vmem:[#allocation2] sm:$0x3]
          %v399 = vlaneseq
          %v400 = vshrl.u32 %v399, 7
          %v401 = vsub.s32 0, %v400
          %v402 = vrot.slane %v397, %v401
          %v403 = vlaneseq
          %v404 = vshrl.u32 %v403, 7
          %v405 = vsub.s32 1, %v404
          %v406 = vrot.slane %v397, %v405
          %vm409 = vcmask 1040384
          %v410 = vsel %vm409, %v402, 0.0
          %v411 = vsel %vm409, %v406, 0.0
          %v412 = vadd.f32 %v410, %v411
          %413 = vadd.xlane.f32.xlu0 %v412
          %v414 = vpop.xlane.xlu0 %413
          %v415 = vrot.slane %v414, 4
          %v416 = vadd.f32 %v414, %v415
          %v417 = vrot.slane %v416, 2
          %v418 = vadd.f32 %v416, %v417
          %v419 = vrot.slane %v418, 1
          %v420 = vadd.f32 %v418, %v419
          %s421 = vtos %v420
          %s422 = smul.f32 %s421, 0.001953125
          %s423 = scalar_lea.smem [#allocation8], 0
          %424 = sst [smem:[%s423]] %s422
        $region44: #{tpu_custom_call.1} parent=27 // pred_fallthru
          _
        // Predicated region
        $region45: #{tpu_custom_call.1} parent=27 // pred_check
          %p425 = pneg %p101
        $region46: #{tpu_custom_call.1} parent=27 // pred_check_branch
          %427 = sbr.rel (%p425) target = $region48
        $region47: #{tpu_custom_call.1} parent=27 // pred_region
          %s429 = ssub.s32 16, 16
          %430 = vsyncadd [#allocation5], %s429
          %433 = dma.smem_to_hbm [#allocation8], 16, %s2, [#allocation5]
        $region48: #{tpu_custom_call.1} parent=27 // pred_fallthru
          _
        // Predicated region
        $region49: #{tpu_custom_call.1} parent=27 // pred_check
          %p434 = pneg %p101
        $region50: #{tpu_custom_call.1} parent=27 // pred_check_branch
          %436 = sbr.rel (%p434) target = $region52
        $region51: #{tpu_custom_call.1} parent=27 // pred_region
          %437 = dma.done [#allocation5], 16
        $region52: #{tpu_custom_call.1} parent=27 // pred_fallthru
          _
        %438 = sfence
      $region28: #{tpu_custom_call.1} parent=5 // pred_fallthru
        _
      %p439 = scmp.le.s32.totalorder 2, %s15
      // Predicated region
      $region53: #{tpu_custom_call.1} parent=5 // pred_check
        %p440 = pneg %p439
      $region54: #{tpu_custom_call.1} parent=5 // pred_check_branch
        %442 = sbr.rel (%p440) target = $region56
      $region55: #{tpu_custom_call.1} parent=5 // pred_region
        %s443 = ssub.s32 %s15, 2
      $region56: #{tpu_custom_call.1} parent=5 // pred_fallthru
        _
    $region6: #{tpu_custom_call.1} parent=1 // loop_footer
      %s19 = sadd.s32 1, %s15
    $region7: #{tpu_custom_call.1} parent=1 // loop_footer_branch
      %14 = sbr.rel target = $region3
    $region8: #{tpu_custom_call.1} parent=1 // loop_exit
      _
    %444 = vsyncpa [#allocation4], 1
    %s445 = scalar_lea.sflag [#allocation4], 1
    %446 = vsyncpa %s445, 1
    %447 = vsyncpa [#allocation7], 1
    %s448 = scalar_lea.sflag [#allocation7], 1
    %449 = vsyncpa %s448, 1
    %450 = vsyncpa [#allocation5], 1
    %s451 = scalar_lea.sflag [#allocation5], 1
    %452 = vsyncpa %s451, 1

</llo_original>
